<compile_context>
chip_gen: v5e
topology: v5e:2x2
jax: 0.10.0
libtpu: 0.0.40
codegen_flags: <defaults>
</compile_context>

<pallas_src>
import functools

import jax
import jax.numpy as jnp
from jax import lax
from jax.experimental import pallas as pl
from jax.experimental.pallas import tpu as pltpu

BN_EPS = 1e-5

# Explicit scoped-VMEM budget: leaves headroom inside v7x's 64 MiB physical VMEM
# (our double-buffered tiles use far less), and is well under v5e/v6e's 128 MiB.
_VMEM_LIMIT = 48 * 1024 * 1024


def _round_up(x, m):
    return ((x + m - 1) // m) * m


def _make_stats_kernel(inv_m):
    """Pass 1: accumulate per-channel sum / sum-of-squares across M tiles,
    then emit BN scale/shift on the last grid step."""

    def stats_kernel(cols_ref, w_ref, gamma_ref, beta_ref,
                     scale_ref, shift_ref, sum_sc, sq_sc):
        i = pl.program_id(0)

        @pl.when(i == 0)
        def _init():
            sum_sc[...] = jnp.zeros_like(sum_sc)
            sq_sc[...] = jnp.zeros_like(sq_sc)

        # bf16 operands, f32 accumulate on the MXU.
        conv = jnp.dot(cols_ref[...], w_ref[...],
                       preferred_element_type=jnp.float32)
        sum_sc[...] += jnp.sum(conv, axis=0, keepdims=True)
        sq_sc[...] += jnp.sum(conv * conv, axis=0, keepdims=True)

        @pl.when(i == pl.num_programs(0) - 1)
        def _finalize():
            mean = sum_sc[...] * inv_m
            # single-pass (E[x^2]-E[x]^2) variance, accumulated in f32, clamped >= 0
            var = jnp.maximum(sq_sc[...] * inv_m - mean * mean, 0.0)
            scale = gamma_ref[...] * lax.rsqrt(var + BN_EPS)
            scale_ref[...] = scale
            shift_ref[...] = beta_ref[...] - mean * scale

    return stats_kernel


def _apply_kernel(cols_ref, w_ref, scale_ref, shift_ref, o_ref):
    """Pass 2: recompute the tile matmul and apply fused BN scale/shift + ReLU."""
    conv = jnp.dot(cols_ref[...], w_ref[...], preferred_element_type=jnp.float32)
    y = conv * scale_ref[...] + shift_ref[...]
    o_ref[...] = jnp.maximum(y, 0.0).astype(o_ref.dtype)


@functools.partial(jax.jit, static_argnames=("k", "p", "tile_m"))
def conv_relu_forward(x_nchw, weight, gamma, beta, *, k=3, p=1, tile_m=256):
    """x_nchw: (N, Cin, H, W), weight: (Cout, Cin, k, k). Returns (N, Cout, H, W).

    tile_m: rows of the im2col matrix per grid step.  Raise to 1024-2048 on v6e
    (128 MiB VMEM) for large problems; keep modest on v7x (64 MiB VMEM/TC).
    """
    N, Cin, H, W = x_nchw.shape
    Cout = weight.shape[0]

    # --- glue: NCHW -> NHWC, pad, im2col (XLA side) --------------------------
    # TODO(synk): the k*k im2col duplication is still materialized in HBM by XLA;
    # removing it needs overlapping (halo) input windows per M-tile, i.e. manual
    # make_async_copy double-buffering from an NHWC HBM ref — left as follow-up.
    xh = jnp.transpose(x_nchw, (0, 2, 3, 1))                     # (N, H, W, Cin)
    xp = jnp.pad(xh, ((0, 0), (p, p), (p, p), (0, 0)))           # (N, H+2p, W+2p, Cin)
    patches = [xp[:, dy:dy + H, dx:dx + W, :]
               for dy in range(k) for dx in range(k)]            # (dy, dx) order
    cols = jnp.concatenate(patches, axis=-1)                     # (N, H, W, k*k*Cin)

    M = N * H * W
    K = Cin * k * k
    cols = cols.reshape(M, K)

    # Padding:
    #  - M up to a multiple of tile_m (zero rows contribute 0 to the BN sums;
    #    mean/var are divided by the true M below),
    #  - K up to a multiple of 8 (sublane alignment of the RHS),
    #  - Cout up to a multiple of 128 (lane-dense output stores + full MXU columns;
    #    padded channels have zero weight/gamma/beta so they stay exactly 0).
    Mp = _round_up(M, tile_m)
    Kp = _round_up(K, 8)
    Cp = _round_up(Cout, 128)
    n_tiles = Mp // tile_m

    # bf16 operands halve HBM traffic for the dominant cols stream and use the
    # native bf16 MXU path (important on v5e, which has no fast f32 matmul).
    cols = jnp.pad(cols, ((0, Mp - M), (0, Kp - K))).astype(jnp.bfloat16)

    # weight (Cout, Cin, kh, kw) -> (kh, kw, Cin, Cout) -> (K, Cout): matches the
    # (dy, dx, cin) ordering of `cols`.
    w_mat = jnp.transpose(weight, (2, 3, 1, 0)).reshape(K, Cout)
    w_mat = jnp.pad(w_mat, ((0, Kp - K), (0, Cp - Cout))).astype(jnp.bfloat16)

    gamma2 = jnp.pad(gamma.reshape(1, Cout).astype(jnp.float32),
                     ((0, 0), (0, Cp - Cout)))
    beta2 = jnp.pad(beta.reshape(1, Cout).astype(jnp.float32),
                    ((0, 0), (0, Cp - Cout)))

    cols_spec = pl.BlockSpec((tile_m, Kp), lambda i: (i, 0))
    w_spec = pl.BlockSpec((Kp, Cp), lambda i: (0, 0))
    vec_spec = pl.BlockSpec((1, Cp), lambda i: (0, 0))

    # --- pass 1: global batch statistics -> per-channel BN scale/shift -------
    scale, shift = pl.pallas_call(
        _make_stats_kernel(1.0 / float(M)),
        out_shape=(jax.ShapeDtypeStruct((1, Cp), jnp.float32),
                   jax.ShapeDtypeStruct((1, Cp), jnp.float32)),
        grid_spec=pltpu.PrefetchScalarGridSpec(
            num_scalar_prefetch=0,
            grid=(n_tiles,),
            in_specs=[cols_spec, w_spec, vec_spec, vec_spec],
            out_specs=[vec_spec, vec_spec],
            scratch_shapes=[pltpu.VMEM((1, Cp), jnp.float32),
                            pltpu.VMEM((1, Cp), jnp.float32)]),
        compiler_params=pltpu.CompilerParams(
            dimension_semantics=("arbitrary",),       # M is the BN reduction axis
            vmem_limit_bytes=_VMEM_LIMIT),
    )(cols, w_mat, gamma2, beta2)

    # --- pass 2: recompute tile matmul, fused scale/shift + ReLU -------------
    out_flat = pl.pallas_call(
        _apply_kernel,
        out_shape=jax.ShapeDtypeStruct((Mp, Cp), jnp.float32),
        grid_spec=pltpu.PrefetchScalarGridSpec(
            num_scalar_prefetch=0,
            grid=(n_tiles,),
            in_specs=[cols_spec, w_spec, vec_spec, vec_spec],
            out_specs=pl.BlockSpec((tile_m, Cp), lambda i: (i, 0))),
        compiler_params=pltpu.CompilerParams(
            dimension_semantics=("parallel",),        # independent tiles; uses both TCs on v7x
            vmem_limit_bytes=_VMEM_LIMIT),
    )(cols, w_mat, scale, shift)

    # Strip M / channel padding.
    out = out_flat[:M, :Cout].reshape(N, H, W, Cout)
    # TODO(synk): in an NHWC end-to-end network this transpose should be dropped;
    # it exists only to honor the PyTorch NCHW output contract.
    return jnp.transpose(out, (0, 3, 1, 2))


def reference_forward(x_nchw, weight, gamma, beta):
    """Pure-JAX reference (conv + training-mode BN + ReLU)."""
    conv = lax.conv_general_dilated(
        x_nchw.astype(jnp.float32), weight.astype(jnp.float32),
        window_strides=(1, 1), padding=((1, 1), (1, 1)),
        dimension_numbers=("NCHW", "OIHW", "NCHW"))
    mean = jnp.mean(conv, axis=(0, 2, 3), keepdims=True)
    var = jnp.mean((conv - mean) ** 2, axis=(0, 2, 3), keepdims=True)
    y = (conv - mean) * lax.rsqrt(var + BN_EPS)
    y = y * gamma.reshape(1, -1, 1, 1) + beta.reshape(1, -1, 1, 1)
    return jnp.maximum(y, 0.0)


if __name__ == "__main__":
    N, Cin, Cout, H, W, k = 2, 4, 8, 16, 16, 3

    key = jax.random.PRNGKey(0)
    kx, kw = jax.random.split(key)

    x = jax.random.normal(kx, (N, Cin, H, W), dtype=jnp.float32)

    # Deterministic kaiming_normal_-style init: std = sqrt(2 / fan_in)
    fan_in = Cin * k * k
    weight = jax.random.normal(kw, (Cout, Cin, k, k), dtype=jnp.float32) * jnp.sqrt(2.0 / fan_in)
    gamma = jnp.ones((Cout,), dtype=jnp.float32)   # bn.weight.fill_(1)
    beta = jnp.zeros((Cout,), dtype=jnp.float32)   # bn.bias.zero_()

    out = conv_relu_forward(x, weight, gamma, beta, k=k, p=1)
    out = jax.block_until_ready(out)

    ref = reference_forward(x, weight, gamma, beta)
    assert out.shape == (N, Cout, H, W)
    assert jnp.allclose(out, ref, atol=5e-2, rtol=5e-2)

    print("KERNEL_OK")
</pallas_src>

<mosaic_0001>
module attributes {stable_mosaic.version = 11 : i64} {
  func.func @_apply_kernel(%arg0: i32, %arg1: memref<256x40xbf16, #tpu.memory_space<vmem>>, %arg2: memref<40x128xbf16, #tpu.memory_space<vmem>>, %arg3: memref<1x128xf32, #tpu.memory_space<vmem>>, %arg4: memref<1x128xf32, #tpu.memory_space<vmem>>, %arg5: memref<256x128xf32, #tpu.memory_space<vmem>>) attributes {dimension_semantics = [#tpu.dimension_semantics<parallel>], iteration_bounds = array<i64: 2>, scalar_prefetch = 0 : i64, scratch_operands = 0 : i64, tpu.core_type = #tpu.core_type<tc>, window_params = [{transform_indices = @transform_0, window_bounds = array<i64: 256, 40>}, {pipeline_mode = #tpu.pipeline_mode<synchronous>, transform_indices = @transform_1, window_bounds = array<i64: 40, 128>}, {pipeline_mode = #tpu.pipeline_mode<synchronous>, transform_indices = @transform_2, window_bounds = array<i64: 1, 128>}, {pipeline_mode = #tpu.pipeline_mode<synchronous>, transform_indices = @transform_3, window_bounds = array<i64: 1, 128>}, {transform_indices = @transform_4, window_bounds = array<i64: 256, 128>}]} {
    %c0 = arith.constant 0 : index
    %c0_0 = arith.constant 0 : index
    %0 = vector.load %arg1[%c0, %c0_0] : memref<256x40xbf16, #tpu.memory_space<vmem>>, vector<256x40xbf16>
    %c0_1 = arith.constant 0 : index
    %c0_2 = arith.constant 0 : index
    %1 = vector.load %arg2[%c0_1, %c0_2] : memref<40x128xbf16, #tpu.memory_space<vmem>>, vector<40x128xbf16>
    %cst = arith.constant dense<0.000000e+00> : vector<256x128xf32>
    %2 = tpu.matmul %0, %1, %cst {dimension_numbers = #tpu.dot_dimension_numbers<[1], [0], [0], [1], [0, 0, 1, 1], [], []>} : vector<256x40xbf16>, vector<40x128xbf16>, vector<256x128xf32> -> vector<256x128xf32>
    %c0_3 = arith.constant 0 : index
    %c0_4 = arith.constant 0 : index
    %3 = vector.load %arg3[%c0_3, %c0_4] : memref<1x128xf32, #tpu.memory_space<vmem>>, vector<1x128xf32>
    %4 = vector.broadcast %3 : vector<1x128xf32> to vector<256x128xf32>
    %5 = arith.mulf %2, %4 : vector<256x128xf32>
    %c0_5 = arith.constant 0 : index
    %c0_6 = arith.constant 0 : index
    %6 = vector.load %arg4[%c0_5, %c0_6] : memref<1x128xf32, #tpu.memory_space<vmem>>, vector<1x128xf32>
    %7 = vector.broadcast %6 : vector<1x128xf32> to vector<256x128xf32>
    %8 = arith.addf %5, %7 : vector<256x128xf32>
    %cst_7 = arith.constant 0.000000e+00 : f32
    %9 = vector.broadcast %cst_7 : f32 to vector<256x128xf32>
    %10 = arith.maximumf %8, %9 : vector<256x128xf32>
    %c0_8 = arith.constant 0 : index
    %c0_9 = arith.constant 0 : index
    %11 = vector.load %arg5[%c0_8, %c0_9] : memref<256x128xf32, #tpu.memory_space<vmem>>, vector<256x128xf32>
    tpu.vector_store %arg5[%c0_8, %c0_9], %10 {strides = array<i32>} : memref<256x128xf32, #tpu.memory_space<vmem>>, vector<256x128xf32>,
    return
  }
  func.func @transform_0(%arg0: i32) -> (i32, i32) {
    %c0_i32 = arith.constant 0 : i32
    %c0_i32_0 = arith.constant 0 : i32
    return %arg0, %c0_i32 : i32, i32
  }
  func.func @transform_1(%arg0: i32) -> (i32, i32) {
    %c0_i32 = arith.constant 0 : i32
    %c0_i32_0 = arith.constant 0 : i32
    %c0_i32_1 = arith.constant 0 : i32
    return %c0_i32, %c0_i32_0 : i32, i32
  }
  func.func @transform_2(%arg0: i32) -> (i32, i32) {
    %c0_i32 = arith.constant 0 : i32
    %c0_i32_0 = arith.constant 0 : i32
    %c0_i32_1 = arith.constant 0 : i32
    return %c0_i32, %c0_i32_0 : i32, i32
  }
  func.func @transform_3(%arg0: i32) -> (i32, i32) {
    %c0_i32 = arith.constant 0 : i32
    %c0_i32_0 = arith.constant 0 : i32
    %c0_i32_1 = arith.constant 0 : i32
    return %c0_i32, %c0_i32_0 : i32, i32
  }
  func.func @transform_4(%arg0: i32) -> (i32, i32) {
    %c0_i32 = arith.constant 0 : i32
    %c0_i32_0 = arith.constant 0 : i32
    return %arg0, %c0_i32 : i32, i32
  }
}

module attributes {stable_mosaic.version = 11 : i64} {
  func.func @stats_kernel(%arg0: i32, %arg1: memref<256x40xbf16, #tpu.memory_space<vmem>>, %arg2: memref<40x128xbf16, #tpu.memory_space<vmem>>, %arg3: memref<1x128xf32, #tpu.memory_space<vmem>>, %arg4: memref<1x128xf32, #tpu.memory_space<vmem>>, %arg5: memref<1x128xf32, #tpu.memory_space<vmem>>, %arg6: memref<1x128xf32, #tpu.memory_space<vmem>>, %arg7: memref<1x128xf32, #tpu.memory_space<vmem>>, %arg8: memref<1x128xf32, #tpu.memory_space<vmem>>) attributes {dimension_semantics = [#tpu.dimension_semantics<arbitrary>], iteration_bounds = array<i64: 2>, scalar_prefetch = 0 : i64, scratch_operands = 2 : i64, tpu.core_type = #tpu.core_type<tc>, window_params = [{transform_indices = @transform_0, window_bounds = array<i64: 256, 40>}, {pipeline_mode = #tpu.pipeline_mode<synchronous>, transform_indices = @transform_1, window_bounds = array<i64: 40, 128>}, {pipeline_mode = #tpu.pipeline_mode<synchronous>, transform_indices = @transform_2, window_bounds = array<i64: 1, 128>}, {pipeline_mode = #tpu.pipeline_mode<synchronous>, transform_indices = @transform_3, window_bounds = array<i64: 1, 128>}, {pipeline_mode = #tpu.pipeline_mode<synchronous>, transform_indices = @transform_4, window_bounds = array<i64: 1, 128>}, {pipeline_mode = #tpu.pipeline_mode<synchronous>, transform_indices = @transform_5, window_bounds = array<i64: 1, 128>}]} {
    %c0_i32 = arith.constant 0 : i32
    %0 = arith.cmpi eq, %arg0, %c0_i32 : i32
    %1 = arith.extui %0 : i1 to i32
    %c0_i32_0 = arith.constant 0 : i32
    %2 = arith.cmpi ne, %1, %c0_i32_0 : i32
    scf.if %2 {
      %cst_15 = arith.constant 0.000000e+00 : f32
      %20 = vector.broadcast %cst_15 : f32 to vector<1x128xf32>
      %c0_16 = arith.constant 0 : index
      %c0_17 = arith.constant 0 : index
      %21 = vector.load %arg7[%c0_16, %c0_17] : memref<1x128xf32, #tpu.memory_space<vmem>>, vector<1x128xf32>
      tpu.vector_store %arg7[%c0_16, %c0_17], %20 {strides = array<i32>} : memref<1x128xf32, #tpu.memory_space<vmem>>, vector<1x128xf32>,
      %cst_18 = arith.constant 0.000000e+00 : f32
      %22 = vector.broadcast %cst_18 : f32 to vector<1x128xf32>
      %c0_19 = arith.constant 0 : index
      %c0_20 = arith.constant 0 : index
      %23 = vector.load %arg8[%c0_19, %c0_20] : memref<1x128xf32, #tpu.memory_space<vmem>>, vector<1x128xf32>
      tpu.vector_store %arg8[%c0_19, %c0_20], %22 {strides = array<i32>} : memref<1x128xf32, #tpu.memory_space<vmem>>, vector<1x128xf32>,
    } else {
    }
    %c0 = arith.constant 0 : index
    %c0_1 = arith.constant 0 : index
    %3 = vector.load %arg1[%c0, %c0_1] : memref<256x40xbf16, #tpu.memory_space<vmem>>, vector<256x40xbf16>
    %c0_2 = arith.constant 0 : index
    %c0_3 = arith.constant 0 : index
    %4 = vector.load %arg2[%c0_2, %c0_3] : memref<40x128xbf16, #tpu.memory_space<vmem>>, vector<40x128xbf16>
    %cst = arith.constant dense<0.000000e+00> : vector<256x128xf32>
    %5 = tpu.matmul %3, %4, %cst {dimension_numbers = #tpu.dot_dimension_numbers<[1], [0], [0], [1], [0, 0, 1, 1], [], []>} : vector<256x40xbf16>, vector<40x128xbf16>, vector<256x128xf32> -> vector<256x128xf32>
    %c0_4 = arith.constant 0 : index
    %c0_5 = arith.constant 0 : index
    %6 = vector.load %arg7[%c0_4, %c0_5] : memref<1x128xf32, #tpu.memory_space<vmem>>, vector<1x128xf32>
    %cst_6 = arith.constant dense<0.000000e+00> : vector<128xf32>
    %7 = vector.multi_reduction <add>, %5, %cst_6 [0] : vector<256x128xf32> to vector<128xf32>
    %8 = vector.shape_cast %7 : vector<128xf32> to vector<1x128xf32>
    %9 = arith.addf %6, %8 : vector<1x128xf32>
    %c0_7 = arith.constant 0 : index
    %c0_8 = arith.constant 0 : index
    %10 = vector.load %arg7[%c0_7, %c0_8] : memref<1x128xf32, #tpu.memory_space<vmem>>, vector<1x128xf32>
    tpu.vector_store %arg7[%c0_7, %c0_8], %9 {strides = array<i32>} : memref<1x128xf32, #tpu.memory_space<vmem>>, vector<1x128xf32>,
    %c0_9 = arith.constant 0 : index
    %c0_10 = arith.constant 0 : index
    %11 = vector.load %arg8[%c0_9, %c0_10] : memref<1x128xf32, #tpu.memory_space<vmem>>, vector<1x128xf32>
    %12 = arith.mulf %5, %5 : vector<256x128xf32>
    %cst_11 = arith.constant dense<0.000000e+00> : vector<128xf32>
    %13 = vector.multi_reduction <add>, %12, %cst_11 [0] : vector<256x128xf32> to vector<128xf32>
    %14 = vector.shape_cast %13 : vector<128xf32> to vector<1x128xf32>
    %15 = arith.addf %11, %14 : vector<1x128xf32>
    %c0_12 = arith.constant 0 : index
    %c0_13 = arith.constant 0 : index
    %16 = vector.load %arg8[%c0_12, %c0_13] : memref<1x128xf32, #tpu.memory_space<vmem>>, vector<1x128xf32>
    tpu.vector_store %arg8[%c0_12, %c0_13], %15 {strides = array<i32>} : memref<1x128xf32, #tpu.memory_space<vmem>>, vector<1x128xf32>,
    %c1_i32 = arith.constant 1 : i32
    %17 = arith.cmpi eq, %arg0, %c1_i32 : i32
    %18 = arith.extui %17 : i1 to i32
    %c0_i32_14 = arith.constant 0 : i32
    %19 = arith.cmpi ne, %18, %c0_i32_14 : i32
    scf.if %19 {
      %c0_15 = arith.constant 0 : index
      %c0_16 = arith.constant 0 : index
      %20 = vector.load %arg7[%c0_15, %c0_16] : memref<1x128xf32, #tpu.memory_space<vmem>>, vector<1x128xf32>
      %cst_17 = arith.constant 0.001953125 : f32
      %21 = vector.broadcast %cst_17 : f32 to vector<1x128xf32>
      %22 = arith.mulf %20, %21 : vector<1x128xf32>
      %c0_18 = arith.constant 0 : index
      %c0_19 = arith.constant 0 : index
      %23 = vector.load %arg8[%c0_18, %c0_19] : memref<1x128xf32, #tpu.memory_space<vmem>>, vector<1x128xf32>
      %cst_20 = arith.constant 0.001953125 : f32
      %24 = vector.broadcast %cst_20 : f32 to vector<1x128xf32>
      %25 = arith.mulf %23, %24 : vector<1x128xf32>
      %26 = arith.mulf %22, %22 : vector<1x128xf32>
      %27 = arith.subf %25, %26 : vector<1x128xf32>
      %cst_21 = arith.constant 0.000000e+00 : f32
      %28 = vector.broadcast %cst_21 : f32 to vector<1x128xf32>
      %29 = arith.maximumf %27, %28 : vector<1x128xf32>
      %c0_22 = arith.constant 0 : index
      %c0_23 = arith.constant 0 : index
      %30 = vector.load %arg3[%c0_22, %c0_23] : memref<1x128xf32, #tpu.memory_space<vmem>>, vector<1x128xf32>
      %cst_24 = arith.constant 9.99999974E-6 : f32
      %31 = vector.broadcast %cst_24 : f32 to vector<1x128xf32>
      %32 = arith.addf %29, %31 : vector<1x128xf32>
      %33 = math.rsqrt %32 : vector<1x128xf32>
      %34 = arith.mulf %30, %33 : vector<1x128xf32>
      %c0_25 = arith.constant 0 : index
      %c0_26 = arith.constant 0 : index
      %35 = vector.load %arg5[%c0_25, %c0_26] : memref<1x128xf32, #tpu.memory_space<vmem>>, vector<1x128xf32>
      tpu.vector_store %arg5[%c0_25, %c0_26], %34 {strides = array<i32>} : memref<1x128xf32, #tpu.memory_space<vmem>>, vector<1x128xf32>,
      %c0_27 = arith.constant 0 : index
      %c0_28 = arith.constant 0 : index
      %36 = vector.load %arg4[%c0_27, %c0_28] : memref<1x128xf32, #tpu.memory_space<vmem>>, vector<1x128xf32>
      %37 = arith.mulf %22, %34 : vector<1x128xf32>
      %38 = arith.subf %36, %37 : vector<1x128xf32>
      %c0_29 = arith.constant 0 : index
      %c0_30 = arith.constant 0 : index
      %39 = vector.load %arg6[%c0_29, %c0_30] : memref<1x128xf32, #tpu.memory_space<vmem>>, vector<1x128xf32>
      tpu.vector_store %arg6[%c0_29, %c0_30], %38 {strides = array<i32>} : memref<1x128xf32, #tpu.memory_space<vmem>>, vector<1x128xf32>,
    } else {
    }
    return
  }
  func.func @transform_0(%arg0: i32) -> (i32, i32) {
    %c0_i32 = arith.constant 0 : i32
    %c0_i32_0 = arith.constant 0 : i32
    return %arg0, %c0_i32 : i32, i32
  }
  func.func @transform_1(%arg0: i32) -> (i32, i32) {
    %c0_i32 = arith.constant 0 : i32
    %c0_i32_0 = arith.constant 0 : i32
    %c0_i32_1 = arith.constant 0 : i32
    return %c0_i32, %c0_i32_0 : i32, i32
  }
  func.func @transform_2(%arg0: i32) -> (i32, i32) {
    %c0_i32 = arith.constant 0 : i32
    %c0_i32_0 = arith.constant 0 : i32
    %c0_i32_1 = arith.constant 0 : i32
    return %c0_i32, %c0_i32_0 : i32, i32
  }
  func.func @transform_3(%arg0: i32) -> (i32, i32) {
    %c0_i32 = arith.constant 0 : i32
    %c0_i32_0 = arith.constant 0 : i32
    %c0_i32_1 = arith.constant 0 : i32
    return %c0_i32, %c0_i32_0 : i32, i32
  }
  func.func @transform_4(%arg0: i32) -> (i32, i32) {
    %c0_i32 = arith.constant 0 : i32
    %c0_i32_0 = arith.constant 0 : i32
    %c0_i32_1 = arith.constant 0 : i32
    return %c0_i32, %c0_i32_0 : i32, i32
  }
  func.func @transform_5(%arg0: i32) -> (i32, i32) {
    %c0_i32 = arith.constant 0 : i32
    %c0_i32_0 = arith.constant 0 : i32
    %c0_i32_1 = arith.constant 0 : i32
    return %c0_i32, %c0_i32_0 : i32, i32
  }
}

</mosaic_0001>

<llo_original>
// kernel: conv_relu_forward.3
$region0: #{conv_relu_forward.3}
  #allocation0 [shape = 'u32[]', space=smem, size = 0x4, offset = 0x4, fixed_abs, tag = 'smem constant byte address 0x4 - core index']
  #allocation1 [shape = 'u32[72,128]{1,0:T(1,128)}', space=vmem, size = 0x9000, scoped, tag = 'internal scratch']
  %s0 = inlined_call_operand.vmem [shape: bf16[512,40], index: 0, kind: input, shape index: {}]
  %s1 = inlined_call_operand.vmem [shape: bf16[40,128], index: 1, kind: input, shape index: {}]
  %s2 = inlined_call_operand.vmem [shape: f32[1,128], index: 2, kind: input, shape index: {}]
  %s3 = inlined_call_operand.vmem [shape: f32[1,128], index: 3, kind: input, shape index: {}]
  %s4 = inlined_call_operand.vmem [shape: f32[512,128], index: 4, kind: output, shape index: {}]
  %s5 = sld [smem:[#allocation0]]
  $region49: #{conv_relu_forward.3} parent=0
    _
  %s7 = ssub.s32 1, %s5
  %s8 = scalar_select 0, %s7, %s5
  loop: start=0, step=1, limit=4
  $region2: #{conv_relu_forward.3} parent=0 // loop_pre_header
    _
  $region3: #{conv_relu_forward.3} parent=0 // loop_header
    %s10 = sphi 0, %s14
    %p11 = scmp.ge.s32.totalorder %s10, 4
    %s20 = sphi 0, %s22
    %s23 = sphi 0, %s20
    %s24 = sphi 0, %s23
    %s40 = sphi 0, %s24
    %s44 = sphi 0, %s44
    %s46 = sphi 0, %s44
    %s47 = sphi 0, %s46
    %s61 = sphi 0, %s47
    %s65 = sphi 0, %s65
    %s67 = sphi 0, %s65
    %s68 = sphi 0, %s67
    %s82 = sphi 0, %s68
    %s86 = sphi 0, %s86
    %s88 = sphi 0, %s86
    %s89 = sphi 0, %s88
    %s103 = sphi 0, %s89
    %s109 = sphi 0, %s111
    %s112 = sphi 0, %s109
    %s113 = sphi 0, %s112
    %s129 = sphi 0, %s113
  $region4: #{conv_relu_forward.3} parent=0 // loop_header_branch
    %13 = sbr.rel (%p11) target = $region8
  $region5: #{conv_relu_forward.3} parent=0 // loop_body
    %s15 = ssub.s32 %s10, 1
    %s16 = ssub.s32 %s10, 2
    %s17 = sadd.s32 %s10, 1
    %s18 = ssub.s32 %s10, %s17
    %p19 = scmp.eq.s32.totalorder %s18, 0
    %s21 = sadd.s32 %s20, 1
    %s22 = scalar_select %p19, %s20, %s21
    %p25 = pneg %p19
    %p26 = scmp.eq.s32.totalorder %s10, 1
    %p27 = por %p25, %p26
    %p28 = scmp.ne.s32.totalorder %s20, %s23
    %p29 = scmp.eq.s32.totalorder %s10, 0
    %p30 = por %p28, %p29
    %p31 = scmp.ne.s32.totalorder %s20, %s23
    %p32 = scmp.eq.s32.totalorder %s15, 1
    %p33 = por %p31, %p32
    %p34 = scmp.ne.s32.totalorder %s23, %s24
    %p35 = scmp.eq.s32.totalorder %s15, 0
    %p36 = por %p34, %p35
    %p37 = scmp.ne.s32.totalorder %s23, %s24
    %p38 = scmp.eq.s32.totalorder %s16, 1
    %p39 = por %p37, %p38
    %p41 = scmp.ne.s32.totalorder %s24, %s40
    %p42 = scmp.eq.s32.totalorder %s16, 0
    %p43 = por %p41, %p42
    %s45 = sadd.s32 %s44, 1
    %p48 = scmp.eq.s32.totalorder %s10, 1
    %p49 = scmp.ne.s32.totalorder %s44, %s46
    %p50 = scmp.eq.s32.totalorder %s10, 0
    %p51 = por %p49, %p50
    %p52 = scmp.ne.s32.totalorder %s44, %s46
    %p53 = scmp.eq.s32.totalorder %s15, 1
    %p54 = por %p52, %p53
    %p55 = scmp.ne.s32.totalorder %s46, %s47
    %p56 = scmp.eq.s32.totalorder %s15, 0
    %p57 = por %p55, %p56
    %p58 = scmp.ne.s32.totalorder %s46, %s47
    %p59 = scmp.eq.s32.totalorder %s16, 1
    %p60 = por %p58, %p59
    %p62 = scmp.ne.s32.totalorder %s47, %s61
    %p63 = scmp.eq.s32.totalorder %s16, 0
    %p64 = por %p62, %p63
    %s66 = sadd.s32 %s65, 1
    %p69 = scmp.eq.s32.totalorder %s10, 1
    %p70 = scmp.ne.s32.totalorder %s65, %s67
    %p71 = scmp.eq.s32.totalorder %s10, 0
    %p72 = por %p70, %p71
    %p73 = scmp.ne.s32.totalorder %s65, %s67
    %p74 = scmp.eq.s32.totalorder %s15, 1
    %p75 = por %p73, %p74
    %p76 = scmp.ne.s32.totalorder %s67, %s68
    %p77 = scmp.eq.s32.totalorder %s15, 0
    %p78 = por %p76, %p77
    %p79 = scmp.ne.s32.totalorder %s67, %s68
    %p80 = scmp.eq.s32.totalorder %s16, 1
    %p81 = por %p79, %p80
    %p83 = scmp.ne.s32.totalorder %s68, %s82
    %p84 = scmp.eq.s32.totalorder %s16, 0
    %p85 = por %p83, %p84
    %s87 = sadd.s32 %s86, 1
    %p90 = scmp.eq.s32.totalorder %s10, 1
    %p91 = scmp.ne.s32.totalorder %s86, %s88
    %p92 = scmp.eq.s32.totalorder %s10, 0
    %p93 = por %p91, %p92
    %p94 = scmp.ne.s32.totalorder %s86, %s88
    %p95 = scmp.eq.s32.totalorder %s15, 1
    %p96 = por %p94, %p95
    %p97 = scmp.ne.s32.totalorder %s88, %s89
    %p98 = scmp.eq.s32.totalorder %s15, 0
    %p99 = por %p97, %p98
    %p100 = scmp.ne.s32.totalorder %s88, %s89
    %p101 = scmp.eq.s32.totalorder %s16, 1
    %p102 = por %p100, %p101
    %p104 = scmp.ne.s32.totalorder %s89, %s103
    %p105 = scmp.eq.s32.totalorder %s16, 0
    %p106 = por %p104, %p105
    %s107 = ssub.s32 %s10, %s17
    %p108 = scmp.eq.s32.totalorder %s107, 0
    %s110 = sadd.s32 %s109, 1
    %s111 = scalar_select %p108, %s109, %s110
    %p114 = pneg %p108
    %p115 = scmp.eq.s32.totalorder %s10, 1
    %p116 = por %p114, %p115
    %p117 = scmp.ne.s32.totalorder %s109, %s112
    %p118 = scmp.eq.s32.totalorder %s10, 0
    %p119 = por %p117, %p118
    %p120 = scmp.ne.s32.totalorder %s109, %s112
    %p121 = scmp.eq.s32.totalorder %s15, 1
    %p122 = por %p120, %p121
    %p123 = scmp.ne.s32.totalorder %s112, %s113
    %p124 = scmp.eq.s32.totalorder %s15, 0
    %p125 = por %p123, %p124
    %p126 = scmp.ne.s32.totalorder %s112, %s113
    %p127 = scmp.eq.s32.totalorder %s16, 1
    %p128 = por %p126, %p127
    %p130 = scmp.ne.s32.totalorder %s113, %s129
    %p131 = scmp.eq.s32.totalorder %s16, 0
    %p132 = por %p130, %p131
    %p133 = scmp.le.s32.totalorder 1, %s10
    %p134 = scmp.lt.s32.totalorder %s10, 3
    %p135 = pnand %p133, %p134
    %p136 = pneg %p135
    // Predicated region
    $region9: #{conv_relu_forward.3} parent=5 // pred_check
      _
    $region10: #{conv_relu_forward.3} parent=5 // pred_check_branch
      %138 = sbr.rel (%p135) target = $region12
    $region11: #{conv_relu_forward.3} parent=5 // pred_region
      %s139 = ssub.s32 %s10, 1
      // Predicated region
      $region13: #{conv_relu_forward.3} parent=11 // pred_check
        %p140 = pneg %p57
      $region14: #{conv_relu_forward.3} parent=11 // pred_check_branch
        %142 = sbr.rel (%p140) target = $region16
      $region15: #{conv_relu_forward.3} parent=11 // pred_region
        _
      $region16: #{conv_relu_forward.3} parent=11 // pred_fallthru
        _
      // Predicated region
      $region17: #{conv_relu_forward.3} parent=11 // pred_check
        %p143 = pneg %p78
      $region18: #{conv_relu_forward.3} parent=11 // pred_check_branch
        %145 = sbr.rel (%p143) target = $region20
      $region19: #{conv_relu_forward.3} parent=11 // pred_region
        _
      $region20: #{conv_relu_forward.3} parent=11 // pred_fallthru
        _
      // Predicated region
      $region21: #{conv_relu_forward.3} parent=11 // pred_check
        %p146 = pneg %p99
      $region22: #{conv_relu_forward.3} parent=11 // pred_check_branch
        %148 = sbr.rel (%p146) target = $region24
      $region23: #{conv_relu_forward.3} parent=11 // pred_region
        _
      $region24: #{conv_relu_forward.3} parent=11 // pred_fallthru
        _
    $region12: #{conv_relu_forward.3} parent=5 // pred_fallthru
      _
    %p149 = scmp.lt.s32.totalorder %s10, 2
    // Predicated region
    $region25: #{conv_relu_forward.3} parent=5 // pred_check
      %p150 = pneg %p149
    $region26: #{conv_relu_forward.3} parent=5 // pred_check_branch
      %152 = sbr.rel (%p150) target = $region28
    $region27: #{conv_relu_forward.3} parent=5 // pred_region
      // Predicated region
      $region29: #{conv_relu_forward.3} parent=27 // pred_check
        %p153 = pneg %p30
      $region30: #{conv_relu_forward.3} parent=27 // pred_check_branch
        %155 = sbr.rel (%p153) target = $region32
      $region31: #{conv_relu_forward.3} parent=27 // pred_region
        %s156 = smul.u32 32, %s10
        %p157 = scmp.lt.s32.totalorder %s156, 63
        %s158 = scalar_select %p157, %s156, 63
        %s159 = smul.addr %s158, 4
        %s160 = scalar_lea.vmem %s0, %s159
        %s161 = smul.u32 32, %s10
      $region32: #{conv_relu_forward.3} parent=27 // pred_fallthru
        _
    $region28: #{conv_relu_forward.3} parent=5 // pred_fallthru
      _
    %p162 = scmp.le.s32.totalorder 1, %s10
    %p163 = scmp.lt.s32.totalorder %s10, 3
    %p164 = pnand %p162, %p163
    %p165 = pneg %p164
    // Predicated region
    $region33: #{conv_relu_forward.3} parent=5 // pred_check
      _
    $region34: #{conv_relu_forward.3} parent=5 // pred_check_branch
      %167 = sbr.rel (%p164) target = $region36
    $region35: #{conv_relu_forward.3} parent=5 // pred_region
      %s168 = ssub.s32 %s10, 1
      %s169 = smul.u32 32, %s15
      %p170 = scmp.lt.s32.totalorder %s169, 63
      %s171 = scalar_select %p170, %s169, 63
      %s172 = smul.addr %s171, 4
      %s173 = scalar_lea.vmem %s0, %s172
      %p174 = pneg %p36
      %p175 = pneg %p33
      %p176 = pneg %p57
      %p177 = pneg %p54
      %p178 = pneg %p78
      %p179 = pneg %p75
      %p180 = pneg %p99
      %p181 = pneg %p96
      %p182 = pneg %p125
      %p183 = pneg %p122
      %s184 = smul.u32 32, %s15
      %p185 = scmp.lt.s32.totalorder %s184, 63
      %s186 = scalar_select %p185, %s184, 63
      %s187 = smul.addr %s186, 8
      %s188 = scalar_lea.vmem %s4, %s187
      %s189 = smul.u32 32, %s15
      %p190 = scmp.lt.s32.totalorder %s189, 63
      %s191 = scalar_select %p190, %s189, 63
      %s192 = smul.addr %s191, 4
      %s193 = scalar_lea.vmem %s0, %s192
      %s194 = smul.u32 32, %s15
      %s195 = smul.u32 32, %s15
      %p196 = scmp.lt.s32.totalorder %s195, 63
      %s197 = scalar_select %p196, %s195, 63
      %s198 = smul.addr %s197, 8
      %s199 = scalar_lea.vmem %s4, %s198
      %s200 = smul.u32 32, %s15
      %v202 = vld [vmem:[%s193] sm:$0xf]
      %v203 = vld [vmem:[%s193 + $0x4] sm:$0xf]
      %v204 = vld [vmem:[%s193 + $0x8] sm:$0xf]
      %v205 = vld [vmem:[%s193 + $0xc] sm:$0xf]
      %v206 = vld [vmem:[%s193 + $0x10] sm:$0xf]
      %v207 = vld [vmem:[%s193 + $0x14] sm:$0xf]
      %v208 = vld [vmem:[%s193 + $0x18] sm:$0xf]
      %v209 = vld [vmem:[%s193 + $0x1c] sm:$0xf]
      %v210 = vld [vmem:[%s193 + $0x20] sm:$0xf]
      %v211 = vld [vmem:[%s193 + $0x24] sm:$0xf]
      %v212 = vld [vmem:[%s193 + $0x28] sm:$0xf]
      %v213 = vld [vmem:[%s193 + $0x2c] sm:$0xf]
      %v214 = vld [vmem:[%s193 + $0x30] sm:$0xf]
      %v215 = vld [vmem:[%s193 + $0x34] sm:$0xf]
      %v216 = vld [vmem:[%s193 + $0x38] sm:$0xf]
      %v217 = vld [vmem:[%s193 + $0x3c] sm:$0xf]
      %v218 = vld [vmem:[%s193 + $0x40] sm:$0xf]
      %v219 = vld [vmem:[%s193 + $0x44] sm:$0xf]
      %v220 = vld [vmem:[%s193 + $0x48] sm:$0xf]
      %v221 = vld [vmem:[%s193 + $0x4c] sm:$0xf]
      %v222 = vld [vmem:[%s193 + $0x50] sm:$0xf]
      %v223 = vld [vmem:[%s193 + $0x54] sm:$0xf]
      %v224 = vld [vmem:[%s193 + $0x58] sm:$0xf]
      %v225 = vld [vmem:[%s193 + $0x5c] sm:$0xf]
      %v226 = vld [vmem:[%s193 + $0x60] sm:$0xf]
      %v227 = vld [vmem:[%s193 + $0x64] sm:$0xf]
      %v228 = vld [vmem:[%s193 + $0x68] sm:$0xf]
      %v229 = vld [vmem:[%s193 + $0x6c] sm:$0xf]
      %v230 = vld [vmem:[%s193 + $0x70] sm:$0xf]
      %v231 = vld [vmem:[%s193 + $0x74] sm:$0xf]
      %v232 = vld [vmem:[%s193 + $0x78] sm:$0xf]
      %v233 = vld [vmem:[%s193 + $0x7c] sm:$0xf]
      %v234 = vld [vmem:[%s1] sm:$0xf]
      %v235 = vld [vmem:[%s1 + $0x4] sm:$0xf]
      %v236 = vld [vmem:[%s1 + $0x8] sm:$0xf]
      %v237 = vld [vmem:[%s1 + $0xc] sm:$0xf]
      %v238 = vld [vmem:[%s1 + $0x10] sm:$0xf]
      %v271 = vunpack.c.l.b16 %v202
      %v272 = vunpack.c.l.b16 %v203
      %v273 = vunpack.c.l.b16 %v204
      %v274 = vunpack.c.l.b16 %v205
      %v275 = vunpack.c.l.b16 %v206
      %v276 = vunpack.c.l.b16 %v207
      %v277 = vunpack.c.l.b16 %v208
      %v278 = vunpack.c.l.b16 %v209
      %v279 = vunpack.c.l.b16 %v210
      %v280 = vunpack.c.l.b16 %v211
      %v281 = vunpack.c.l.b16 %v212
      %v282 = vunpack.c.l.b16 %v213
      %v283 = vunpack.c.l.b16 %v214
      %v284 = vunpack.c.l.b16 %v215
      %v285 = vunpack.c.l.b16 %v216
      %v286 = vunpack.c.l.b16 %v217
      %v287 = vunpack.c.l.b16 %v218
      %v288 = vunpack.c.l.b16 %v219
      %v289 = vunpack.c.l.b16 %v220
      %v290 = vunpack.c.l.b16 %v221
      %v291 = vunpack.c.l.b16 %v222
      %v292 = vunpack.c.l.b16 %v223
      %v293 = vunpack.c.l.b16 %v224
      %v294 = vunpack.c.l.b16 %v225
      %v295 = vunpack.c.l.b16 %v226
      %v296 = vunpack.c.l.b16 %v227
      %v297 = vunpack.c.l.b16 %v228
      %v298 = vunpack.c.l.b16 %v229
      %v299 = vunpack.c.l.b16 %v230
      %v300 = vunpack.c.l.b16 %v231
      %v301 = vunpack.c.l.b16 %v232
      %v302 = vunpack.c.l.b16 %v233
      %v303 = vpack.c.b16 %v272, %v271
      %v304 = vpack.c.b16 %v274, %v273
      %v305 = vpack.c.b16 %v276, %v275
      %v306 = vpack.c.b16 %v278, %v277
      %v307 = vpack.c.b16 %v280, %v279
      %v308 = vpack.c.b16 %v282, %v281
      %v309 = vpack.c.b16 %v284, %v283
      %v310 = vpack.c.b16 %v286, %v285
      %v311 = vpack.c.b16 %v288, %v287
      %v312 = vpack.c.b16 %v290, %v289
      %v313 = vpack.c.b16 %v292, %v291
      %v314 = vpack.c.b16 %v294, %v293
      %v315 = vpack.c.b16 %v296, %v295
      %v316 = vpack.c.b16 %v298, %v297
      %v317 = vpack.c.b16 %v300, %v299
      %v318 = vpack.c.b16 %v302, %v301
      %v324 = vunpack.c.l.b16 %v234
      %v325 = vunpack.c.l.b16 %v235
      %v326 = vunpack.c.l.b16 %v236
      %v327 = vunpack.c.l.b16 %v237
      %v328 = vunpack.c.l.b16 %v238
      %v329 = vpack.c.b16 %v325, %v324
      %v330 = vpack.c.b16 %v327, %v326
      %v331 = vpack.c.b16 %v328, %v328
      %vm334 = vcmask 326656
      %v336 = vsel %vm334, %v303, 0
      %v339 = vsel %vm334, %v304, 0
      %v342 = vsel %vm334, %v305, 0
      %v345 = vsel %vm334, %v306, 0
      %v348 = vsel %vm334, %v307, 0
      %v351 = vsel %vm334, %v308, 0
      %v354 = vsel %vm334, %v309, 0
      %v357 = vsel %vm334, %v310, 0
      %v360 = vsel %vm334, %v311, 0
      %v363 = vsel %vm334, %v312, 0
      %v366 = vsel %vm334, %v313, 0
      %v369 = vsel %vm334, %v314, 0
      %v372 = vsel %vm334, %v315, 0
      %v375 = vsel %vm334, %v316, 0
      %v378 = vsel %vm334, %v317, 0
      %v381 = vsel %vm334, %v318, 0
      %vm383 = vcmask 1043456
      %v385 = vsel %vm383, %v331, 0
      %387 = vmatpush.bf16.msra.mxu0 0
      %388 = vmatpush.bf16.msra.mxu0 0
      %389 = vmatpush.bf16.msra.mxu0 0
      %390 = vmatpush.bf16.msra.mxu0 0
      %391 = vmatpush.bf16.msra.mxu0 0
      %392 = vmatpush.bf16.msra.mxu0 %v385
      %393 = vmatpush.bf16.msra.mxu0 %v330
      %394 = vmatpush.bf16.msra.mxu0 %v329
      %395 = vmatmul.bf16.gmra.mxu0 %v336
      %v396 = vpop.f32.mrf.mxu0
      %v397 = vadd.f32 0.0, %v396
      %v398 = vpop.f32.mrf.mxu0
      %v399 = vadd.f32 0.0, %v398
      %400 = vmatmul.bf16.gmra.mxu0 %v339
      %v401 = vpop.f32.mrf.mxu0
      %v402 = vadd.f32 0.0, %v401
      %v403 = vpop.f32.mrf.mxu0
      %v404 = vadd.f32 0.0, %v403
      %405 = vmatmul.bf16.gmra.mxu0 %v342
      %v406 = vpop.f32.mrf.mxu0
      %v407 = vadd.f32 0.0, %v406
      %v408 = vpop.f32.mrf.mxu0
      %v409 = vadd.f32 0.0, %v408
      %410 = vmatmul.bf16.gmra.mxu0 %v345
      %v411 = vpop.f32.mrf.mxu0
      %v412 = vadd.f32 0.0, %v411
      %v413 = vpop.f32.mrf.mxu0
      %v414 = vadd.f32 0.0, %v413
      %415 = vmatmul.bf16.gmra.mxu0 %v348
      %v416 = vpop.f32.mrf.mxu0
      %v417 = vadd.f32 0.0, %v416
      %v418 = vpop.f32.mrf.mxu0
      %v419 = vadd.f32 0.0, %v418
      %420 = vmatmul.bf16.gmra.mxu0 %v351
      %v421 = vpop.f32.mrf.mxu0
      %v422 = vadd.f32 0.0, %v421
      %v423 = vpop.f32.mrf.mxu0
      %v424 = vadd.f32 0.0, %v423
      %425 = vmatmul.bf16.gmra.mxu0 %v354
      %v426 = vpop.f32.mrf.mxu0
      %v427 = vadd.f32 0.0, %v426
      %v428 = vpop.f32.mrf.mxu0
      %v429 = vadd.f32 0.0, %v428
      %430 = vmatmul.bf16.gmra.mxu0 %v357
      %v431 = vpop.f32.mrf.mxu0
      %v432 = vadd.f32 0.0, %v431
      %v433 = vpop.f32.mrf.mxu0
      %v434 = vadd.f32 0.0, %v433
      %435 = vmatmul.bf16.gmra.mxu0 %v360
      %v436 = vpop.f32.mrf.mxu0
      %v437 = vadd.f32 0.0, %v436
      %v438 = vpop.f32.mrf.mxu0
      %v439 = vadd.f32 0.0, %v438
      %440 = vmatmul.bf16.gmra.mxu0 %v363
      %v441 = vpop.f32.mrf.mxu0
      %v442 = vadd.f32 0.0, %v441
      %v443 = vpop.f32.mrf.mxu0
      %v444 = vadd.f32 0.0, %v443
      %445 = vmatmul.bf16.gmra.mxu0 %v366
      %v446 = vpop.f32.mrf.mxu0
      %v447 = vadd.f32 0.0, %v446
      %v448 = vpop.f32.mrf.mxu0
      %v449 = vadd.f32 0.0, %v448
      %450 = vmatmul.bf16.gmra.mxu0 %v369
      %v451 = vpop.f32.mrf.mxu0
      %v452 = vadd.f32 0.0, %v451
      %v453 = vpop.f32.mrf.mxu0
      %v454 = vadd.f32 0.0, %v453
      %455 = vmatmul.bf16.gmra.mxu0 %v372
      %v456 = vpop.f32.mrf.mxu0
      %v457 = vadd.f32 0.0, %v456
      %v458 = vpop.f32.mrf.mxu0
      %v459 = vadd.f32 0.0, %v458
      %460 = vmatmul.bf16.gmra.mxu0 %v375
      %v461 = vpop.f32.mrf.mxu0
      %v462 = vadd.f32 0.0, %v461
      %v463 = vpop.f32.mrf.mxu0
      %v464 = vadd.f32 0.0, %v463
      %465 = vmatmul.bf16.gmra.mxu0 %v378
      %v466 = vpop.f32.mrf.mxu0
      %v467 = vadd.f32 0.0, %v466
      %v468 = vpop.f32.mrf.mxu0
      %v469 = vadd.f32 0.0, %v468
      %470 = vmatmul.bf16.gmra.mxu0 %v381
      %v471 = vpop.f32.mrf.mxu0
      %v472 = vadd.f32 0.0, %v471
      %v473 = vpop.f32.mrf.mxu0
      %v474 = vadd.f32 0.0, %v473
      %475 = vdwg.mxu0
      %v476 = vld [vmem:[%s2] sm:$0x1]
      %v478 = vperm.slane %v476, 0
      %v480 = vmul.f32 %v397, %v478
      %v481 = vmul.f32 %v399, %v478
      %v482 = vmul.f32 %v402, %v478
      %v483 = vmul.f32 %v404, %v478
      %v484 = vmul.f32 %v407, %v478
      %v485 = vmul.f32 %v409, %v478
      %v486 = vmul.f32 %v412, %v478
      %v487 = vmul.f32 %v414, %v478
      %v488 = vmul.f32 %v417, %v478
      %v489 = vmul.f32 %v419, %v478
      %v490 = vmul.f32 %v422, %v478
      %v491 = vmul.f32 %v424, %v478
      %v492 = vmul.f32 %v427, %v478
      %v493 = vmul.f32 %v429, %v478
      %v494 = vmul.f32 %v432, %v478
      %v495 = vmul.f32 %v434, %v478
      %v496 = vmul.f32 %v437, %v478
      %v497 = vmul.f32 %v439, %v478
      %v498 = vmul.f32 %v442, %v478
      %v499 = vmul.f32 %v444, %v478
      %v500 = vmul.f32 %v447, %v478
      %v501 = vmul.f32 %v449, %v478
      %v502 = vmul.f32 %v452, %v478
      %v503 = vmul.f32 %v454, %v478
      %v504 = vmul.f32 %v457, %v478
      %v505 = vmul.f32 %v459, %v478
      %v506 = vmul.f32 %v462, %v478
      %v507 = vmul.f32 %v464, %v478
      %v508 = vmul.f32 %v467, %v478
      %v509 = vmul.f32 %v469, %v478
      %v510 = vmul.f32 %v472, %v478
      %v511 = vmul.f32 %v474, %v478
      %v512 = vld [vmem:[%s3] sm:$0x1]
      %v514 = vperm.slane %v512, 0
      %v516 = vadd.f32 %v480, %v514
      %v517 = vadd.f32 %v481, %v514
      %v518 = vadd.f32 %v482, %v514
      %v519 = vadd.f32 %v483, %v514
      %v520 = vadd.f32 %v484, %v514
      %v521 = vadd.f32 %v485, %v514
      %v522 = vadd.f32 %v486, %v514
      %v523 = vadd.f32 %v487, %v514
      %v524 = vadd.f32 %v488, %v514
      %v525 = vadd.f32 %v489, %v514
      %v526 = vadd.f32 %v490, %v514
      %v527 = vadd.f32 %v491, %v514
      %v528 = vadd.f32 %v492, %v514
      %v529 = vadd.f32 %v493, %v514
      %v530 = vadd.f32 %v494, %v514
      %v531 = vadd.f32 %v495, %v514
      %v532 = vadd.f32 %v496, %v514
      %v533 = vadd.f32 %v497, %v514
      %v534 = vadd.f32 %v498, %v514
      %v535 = vadd.f32 %v499, %v514
      %v536 = vadd.f32 %v500, %v514
      %v537 = vadd.f32 %v501, %v514
      %v538 = vadd.f32 %v502, %v514
      %v539 = vadd.f32 %v503, %v514
      %v540 = vadd.f32 %v504, %v514
      %v541 = vadd.f32 %v505, %v514
      %v542 = vadd.f32 %v506, %v514
      %v543 = vadd.f32 %v507, %v514
      %v544 = vadd.f32 %v508, %v514
      %v545 = vadd.f32 %v509, %v514
      %v546 = vadd.f32 %v510, %v514
      %v547 = vadd.f32 %v511, %v514
      %v548 = vmax.f32 %v516, 0.0
      %v549 = vmax.f32 %v517, 0.0
      %v550 = vmax.f32 %v518, 0.0
      %v551 = vmax.f32 %v519, 0.0
      %v552 = vmax.f32 %v520, 0.0
      %v553 = vmax.f32 %v521, 0.0
      %v554 = vmax.f32 %v522, 0.0
      %v555 = vmax.f32 %v523, 0.0
      %v556 = vmax.f32 %v524, 0.0
      %v557 = vmax.f32 %v525, 0.0
      %v558 = vmax.f32 %v526, 0.0
      %v559 = vmax.f32 %v527, 0.0
      %v560 = vmax.f32 %v528, 0.0
      %v561 = vmax.f32 %v529, 0.0
      %v562 = vmax.f32 %v530, 0.0
      %v563 = vmax.f32 %v531, 0.0
      %v564 = vmax.f32 %v532, 0.0
      %v565 = vmax.f32 %v533, 0.0
      %v566 = vmax.f32 %v534, 0.0
      %v567 = vmax.f32 %v535, 0.0
      %v568 = vmax.f32 %v536, 0.0
      %v569 = vmax.f32 %v537, 0.0
      %v570 = vmax.f32 %v538, 0.0
      %v571 = vmax.f32 %v539, 0.0
      %v572 = vmax.f32 %v540, 0.0
      %v573 = vmax.f32 %v541, 0.0
      %v574 = vmax.f32 %v542, 0.0
      %v575 = vmax.f32 %v543, 0.0
      %v576 = vmax.f32 %v544, 0.0
      %v577 = vmax.f32 %v545, 0.0
      %v578 = vmax.f32 %v546, 0.0
      %v579 = vmax.f32 %v547, 0.0
      %580 = vst [vmem:[%s199] sm:$0xff] %v548
      %581 = vst [vmem:[%s199 + $0x8] sm:$0xff] %v549
      %582 = vst [vmem:[%s199 + $0x10] sm:$0xff] %v550
      %583 = vst [vmem:[%s199 + $0x18] sm:$0xff] %v551
      %584 = vst [vmem:[%s199 + $0x20] sm:$0xff] %v552
      %585 = vst [vmem:[%s199 + $0x28] sm:$0xff] %v553
      %586 = vst [vmem:[%s199 + $0x30] sm:$0xff] %v554
      %587 = vst [vmem:[%s199 + $0x38] sm:$0xff] %v555
      %588 = vst [vmem:[%s199 + $0x40] sm:$0xff] %v556
      %589 = vst [vmem:[%s199 + $0x48] sm:$0xff] %v557
      %590 = vst [vmem:[%s199 + $0x50] sm:$0xff] %v558
      %591 = vst [vmem:[%s199 + $0x58] sm:$0xff] %v559
      %592 = vst [vmem:[%s199 + $0x60] sm:$0xff] %v560
      %593 = vst [vmem:[%s199 + $0x68] sm:$0xff] %v561
      %594 = vst [vmem:[%s199 + $0x70] sm:$0xff] %v562
      %595 = vst [vmem:[%s199 + $0x78] sm:$0xff] %v563
      %596 = vst [vmem:[%s199 + $0x80] sm:$0xff] %v564
      %597 = vst [vmem:[%s199 + $0x88] sm:$0xff] %v565
      %598 = vst [vmem:[%s199 + $0x90] sm:$0xff] %v566
      %599 = vst [vmem:[%s199 + $0x98] sm:$0xff] %v567
      %600 = vst [vmem:[%s199 + $0xa0] sm:$0xff] %v568
      %601 = vst [vmem:[%s199 + $0xa8] sm:$0xff] %v569
      %602 = vst [vmem:[%s199 + $0xb0] sm:$0xff] %v570
      %603 = vst [vmem:[%s199 + $0xb8] sm:$0xff] %v571
      %604 = vst [vmem:[%s199 + $0xc0] sm:$0xff] %v572
      %605 = vst [vmem:[%s199 + $0xc8] sm:$0xff] %v573
      %606 = vst [vmem:[%s199 + $0xd0] sm:$0xff] %v574
      %607 = vst [vmem:[%s199 + $0xd8] sm:$0xff] %v575
      %608 = vst [vmem:[%s199 + $0xe0] sm:$0xff] %v576
      %609 = vst [vmem:[%s199 + $0xe8] sm:$0xff] %v577
      %610 = vst [vmem:[%s199 + $0xf0] sm:$0xff] %v578
      %611 = vst [vmem:[%s199 + $0xf8] sm:$0xff] %v579
      %s612 = smul.u32 32, %s15
      %p613 = scmp.lt.s32.totalorder %s612, 63
      %s614 = scalar_select %p613, %s612, 63
      %s615 = smul.addr %s614, 8
      %s616 = scalar_lea.vmem %s4, %s615
      // Predicated region
      $region37: #{conv_relu_forward.3} parent=35 // pred_check
        %p617 = pneg %p122
      $region38: #{conv_relu_forward.3} parent=35 // pred_check_branch
        %619 = sbr.rel (%p617) target = $region40
      $region39: #{conv_relu_forward.3} parent=35 // pred_region
        %s620 = smul.u32 32, %s15
      $region40: #{conv_relu_forward.3} parent=35 // pred_fallthru
        _
    $region36: #{conv_relu_forward.3} parent=5 // pred_fallthru
      _
    %p621 = scmp.le.s32.totalorder 2, %s10
    // Predicated region
    $region41: #{conv_relu_forward.3} parent=5 // pred_check
      %p622 = pneg %p621
    $region42: #{conv_relu_forward.3} parent=5 // pred_check_branch
      %624 = sbr.rel (%p622) target = $region44
    $region43: #{conv_relu_forward.3} parent=5 // pred_region
      %s625 = ssub.s32 %s10, 2
      // Predicated region
      $region45: #{conv_relu_forward.3} parent=43 // pred_check
        %p626 = pneg %p128
      $region46: #{conv_relu_forward.3} parent=43 // pred_check_branch
        %628 = sbr.rel (%p626) target = $region48
      $region47: #{conv_relu_forward.3} parent=43 // pred_region
        %s629 = smul.u32 32, %s16
        %p630 = scmp.lt.s32.totalorder %s629, 63
        %s631 = scalar_select %p630, %s629, 63
        %s632 = smul.addr %s631, 8
        %s633 = scalar_lea.vmem %s4, %s632
      $region48: #{conv_relu_forward.3} parent=43 // pred_fallthru
        _
    $region44: #{conv_relu_forward.3} parent=5 // pred_fallthru
      _
  $region6: #{conv_relu_forward.3} parent=0 // loop_footer
    %s14 = sadd.s32 1, %s10
  $region7: #{conv_relu_forward.3} parent=0 // loop_footer_branch
    %9 = sbr.rel target = $region3
  $region8: #{conv_relu_forward.3} parent=0 // loop_exit
    _

// kernel: conv_relu_forward.2
$region0: #{conv_relu_forward.2}
  #allocation0 [shape = 'u32[]', space=smem, size = 0x4, offset = 0x4, fixed_abs, tag = 'smem constant byte address 0x4 - core index']
  #allocation1 [shape = 'u32[72,128]{1,0:T(1,128)}', space=vmem, size = 0x9000, scoped, tag = 'internal scratch']
  #allocation2 [shape = 'f32[1,128]{1,0:T(1,128)}', space=vmem, size = 0x200, scoped, tag = 'scratch operand']
  #allocation3 [shape = 'f32[1,128]{1,0:T(1,128)}', space=vmem, size = 0x200, scoped, tag = 'scratch operand']
  %s0 = inlined_call_operand.vmem [shape: bf16[512,40], index: 0, kind: input, shape index: {}]
  %s1 = inlined_call_operand.vmem [shape: bf16[40,128], index: 1, kind: input, shape index: {}]
  %s2 = inlined_call_operand.vmem [shape: f32[1,128], index: 2, kind: input, shape index: {}]
  %s3 = inlined_call_operand.vmem [shape: f32[1,128], index: 3, kind: input, shape index: {}]
  %s4 = inlined_call_operand.vmem [shape: f32[1,128], index: 4, kind: output, shape index: {0}]
  %s5 = inlined_call_operand.vmem [shape: f32[1,128], index: 5, kind: output, shape index: {1}]
  %6 = xla_tuple %s4, %s5
  %s7 = sld [smem:[#allocation0]]
  $region65: #{conv_relu_forward.2} parent=0
    _
  %s9 = ssub.s32 1, %s7
  %s10 = scalar_select 0, %s9, %s7
  loop: start=0, step=1, limit=4
  $region2: #{conv_relu_forward.2} parent=0 // loop_pre_header
    _
  $region3: #{conv_relu_forward.2} parent=0 // loop_header
    %s12 = sphi 0, %s16
    %p13 = scmp.ge.s32.totalorder %s12, 4
    %s22 = sphi 0, %s24
    %s25 = sphi 0, %s22
    %s26 = sphi 0, %s25
    %s42 = sphi 0, %s26
    %s46 = sphi 0, %s46
    %s48 = sphi 0, %s46
    %s49 = sphi 0, %s48
    %s63 = sphi 0, %s49
    %s67 = sphi 0, %s67
    %s69 = sphi 0, %s67
    %s70 = sphi 0, %s69
    %s84 = sphi 0, %s70
    %s88 = sphi 0, %s88
    %s90 = sphi 0, %s88
    %s91 = sphi 0, %s90
    %s105 = sphi 0, %s91
    %s109 = sphi 0, %s109
    %s111 = sphi 0, %s109
    %s112 = sphi 0, %s111
    %s126 = sphi 0, %s112
    %s130 = sphi 0, %s130
    %s132 = sphi 0, %s130
    %s133 = sphi 0, %s132
    %s147 = sphi 0, %s133
  $region4: #{conv_relu_forward.2} parent=0 // loop_header_branch
    %15 = sbr.rel (%p13) target = $region8
  $region5: #{conv_relu_forward.2} parent=0 // loop_body
    %s17 = ssub.s32 %s12, 1
    %s18 = ssub.s32 %s12, 2
    %s19 = sadd.s32 %s12, 1
    %s20 = ssub.s32 %s12, %s19
    %p21 = scmp.eq.s32.totalorder %s20, 0
    %s23 = sadd.s32 %s22, 1
    %s24 = scalar_select %p21, %s22, %s23
    %p27 = pneg %p21
    %p28 = scmp.eq.s32.totalorder %s12, 1
    %p29 = por %p27, %p28
    %p30 = scmp.ne.s32.totalorder %s22, %s25
    %p31 = scmp.eq.s32.totalorder %s12, 0
    %p32 = por %p30, %p31
    %p33 = scmp.ne.s32.totalorder %s22, %s25
    %p34 = scmp.eq.s32.totalorder %s17, 1
    %p35 = por %p33, %p34
    %p36 = scmp.ne.s32.totalorder %s25, %s26
    %p37 = scmp.eq.s32.totalorder %s17, 0
    %p38 = por %p36, %p37
    %p39 = scmp.ne.s32.totalorder %s25, %s26
    %p40 = scmp.eq.s32.totalorder %s18, 1
    %p41 = por %p39, %p40
    %p43 = scmp.ne.s32.totalorder %s26, %s42
    %p44 = scmp.eq.s32.totalorder %s18, 0
    %p45 = por %p43, %p44
    %s47 = sadd.s32 %s46, 1
    %p50 = scmp.eq.s32.totalorder %s12, 1
    %p51 = scmp.ne.s32.totalorder %s46, %s48
    %p52 = scmp.eq.s32.totalorder %s12, 0
    %p53 = por %p51, %p52
    %p54 = scmp.ne.s32.totalorder %s46, %s48
    %p55 = scmp.eq.s32.totalorder %s17, 1
    %p56 = por %p54, %p55
    %p57 = scmp.ne.s32.totalorder %s48, %s49
    %p58 = scmp.eq.s32.totalorder %s17, 0
    %p59 = por %p57, %p58
    %p60 = scmp.ne.s32.totalorder %s48, %s49
    %p61 = scmp.eq.s32.totalorder %s18, 1
    %p62 = por %p60, %p61
    %p64 = scmp.ne.s32.totalorder %s49, %s63
    %p65 = scmp.eq.s32.totalorder %s18, 0
    %p66 = por %p64, %p65
    %s68 = sadd.s32 %s67, 1
    %p71 = scmp.eq.s32.totalorder %s12, 1
    %p72 = scmp.ne.s32.totalorder %s67, %s69
    %p73 = scmp.eq.s32.totalorder %s12, 0
    %p74 = por %p72, %p73
    %p75 = scmp.ne.s32.totalorder %s67, %s69
    %p76 = scmp.eq.s32.totalorder %s17, 1
    %p77 = por %p75, %p76
    %p78 = scmp.ne.s32.totalorder %s69, %s70
    %p79 = scmp.eq.s32.totalorder %s17, 0
    %p80 = por %p78, %p79
    %p81 = scmp.ne.s32.totalorder %s69, %s70
    %p82 = scmp.eq.s32.totalorder %s18, 1
    %p83 = por %p81, %p82
    %p85 = scmp.ne.s32.totalorder %s70, %s84
    %p86 = scmp.eq.s32.totalorder %s18, 0
    %p87 = por %p85, %p86
    %s89 = sadd.s32 %s88, 1
    %p92 = scmp.eq.s32.totalorder %s12, 1
    %p93 = scmp.ne.s32.totalorder %s88, %s90
    %p94 = scmp.eq.s32.totalorder %s12, 0
    %p95 = por %p93, %p94
    %p96 = scmp.ne.s32.totalorder %s88, %s90
    %p97 = scmp.eq.s32.totalorder %s17, 1
    %p98 = por %p96, %p97
    %p99 = scmp.ne.s32.totalorder %s90, %s91
    %p100 = scmp.eq.s32.totalorder %s17, 0
    %p101 = por %p99, %p100
    %p102 = scmp.ne.s32.totalorder %s90, %s91
    %p103 = scmp.eq.s32.totalorder %s18, 1
    %p104 = por %p102, %p103
    %p106 = scmp.ne.s32.totalorder %s91, %s105
    %p107 = scmp.eq.s32.totalorder %s18, 0
    %p108 = por %p106, %p107
    %s110 = sadd.s32 %s109, 1
    %p113 = scmp.eq.s32.totalorder %s12, 1
    %p114 = scmp.ne.s32.totalorder %s109, %s111
    %p115 = scmp.eq.s32.totalorder %s12, 0
    %p116 = por %p114, %p115
    %p117 = scmp.ne.s32.totalorder %s109, %s111
    %p118 = scmp.eq.s32.totalorder %s17, 1
    %p119 = por %p117, %p118
    %p120 = scmp.ne.s32.totalorder %s111, %s112
    %p121 = scmp.eq.s32.totalorder %s17, 0
    %p122 = por %p120, %p121
    %p123 = scmp.ne.s32.totalorder %s111, %s112
    %p124 = scmp.eq.s32.totalorder %s18, 1
    %p125 = por %p123, %p124
    %p127 = scmp.ne.s32.totalorder %s112, %s126
    %p128 = scmp.eq.s32.totalorder %s18, 0
    %p129 = por %p127, %p128
    %s131 = sadd.s32 %s130, 1
    %p134 = scmp.eq.s32.totalorder %s12, 1
    %p135 = scmp.ne.s32.totalorder %s130, %s132
    %p136 = scmp.eq.s32.totalorder %s12, 0
    %p137 = por %p135, %p136
    %p138 = scmp.ne.s32.totalorder %s130, %s132
    %p139 = scmp.eq.s32.totalorder %s17, 1
    %p140 = por %p138, %p139
    %p141 = scmp.ne.s32.totalorder %s132, %s133
    %p142 = scmp.eq.s32.totalorder %s17, 0
    %p143 = por %p141, %p142
    %p144 = scmp.ne.s32.totalorder %s132, %s133
    %p145 = scmp.eq.s32.totalorder %s18, 1
    %p146 = por %p144, %p145
    %p148 = scmp.ne.s32.totalorder %s133, %s147
    %p149 = scmp.eq.s32.totalorder %s18, 0
    %p150 = por %p148, %p149
    %p151 = scmp.le.s32.totalorder 1, %s12
    %p152 = scmp.lt.s32.totalorder %s12, 3
    %p153 = pnand %p151, %p152
    %p154 = pneg %p153
    // Predicated region
    $region9: #{conv_relu_forward.2} parent=5 // pred_check
      _
    $region10: #{conv_relu_forward.2} parent=5 // pred_check_branch
      %156 = sbr.rel (%p153) target = $region12
    $region11: #{conv_relu_forward.2} parent=5 // pred_region
      %s157 = ssub.s32 %s12, 1
      // Predicated region
      $region13: #{conv_relu_forward.2} parent=11 // pred_check
        %p158 = pneg %p59
      $region14: #{conv_relu_forward.2} parent=11 // pred_check_branch
        %160 = sbr.rel (%p158) target = $region16
      $region15: #{conv_relu_forward.2} parent=11 // pred_region
        _
      $region16: #{conv_relu_forward.2} parent=11 // pred_fallthru
        _
      // Predicated region
      $region17: #{conv_relu_forward.2} parent=11 // pred_check
        %p161 = pneg %p80
      $region18: #{conv_relu_forward.2} parent=11 // pred_check_branch
        %163 = sbr.rel (%p161) target = $region20
      $region19: #{conv_relu_forward.2} parent=11 // pred_region
        _
      $region20: #{conv_relu_forward.2} parent=11 // pred_fallthru
        _
      // Predicated region
      $region21: #{conv_relu_forward.2} parent=11 // pred_check
        %p164 = pneg %p101
      $region22: #{conv_relu_forward.2} parent=11 // pred_check_branch
        %166 = sbr.rel (%p164) target = $region24
      $region23: #{conv_relu_forward.2} parent=11 // pred_region
        _
      $region24: #{conv_relu_forward.2} parent=11 // pred_fallthru
        _
    $region12: #{conv_relu_forward.2} parent=5 // pred_fallthru
      _
    %p167 = scmp.lt.s32.totalorder %s12, 2
    // Predicated region
    $region25: #{conv_relu_forward.2} parent=5 // pred_check
      %p168 = pneg %p167
    $region26: #{conv_relu_forward.2} parent=5 // pred_check_branch
      %170 = sbr.rel (%p168) target = $region28
    $region27: #{conv_relu_forward.2} parent=5 // pred_region
      // Predicated region
      $region29: #{conv_relu_forward.2} parent=27 // pred_check
        %p171 = pneg %p32
      $region30: #{conv_relu_forward.2} parent=27 // pred_check_branch
        %173 = sbr.rel (%p171) target = $region32
      $region31: #{conv_relu_forward.2} parent=27 // pred_region
        %s174 = smul.u32 32, %s12
        %p175 = scmp.lt.s32.totalorder %s174, 63
        %s176 = scalar_select %p175, %s174, 63
        %s177 = smul.addr %s176, 4
        %s178 = scalar_lea.vmem %s0, %s177
        %s179 = smul.u32 32, %s12
      $region32: #{conv_relu_forward.2} parent=27 // pred_fallthru
        _
    $region28: #{conv_relu_forward.2} parent=5 // pred_fallthru
      _
    %p180 = scmp.le.s32.totalorder 1, %s12
    %p181 = scmp.lt.s32.totalorder %s12, 3
    %p182 = pnand %p180, %p181
    %p183 = pneg %p182
    // Predicated region
    $region33: #{conv_relu_forward.2} parent=5 // pred_check
      _
    $region34: #{conv_relu_forward.2} parent=5 // pred_check_branch
      %185 = sbr.rel (%p182) target = $region36
    $region35: #{conv_relu_forward.2} parent=5 // pred_region
      %s186 = ssub.s32 %s12, 1
      %s187 = smul.u32 32, %s17
      %p188 = scmp.lt.s32.totalorder %s187, 63
      %s189 = scalar_select %p188, %s187, 63
      %s190 = smul.addr %s189, 4
      %s191 = scalar_lea.vmem %s0, %s190
      %p192 = pneg %p38
      %p193 = pneg %p35
      %p194 = pneg %p59
      %p195 = pneg %p56
      %p196 = pneg %p80
      %p197 = pneg %p77
      %p198 = pneg %p101
      %p199 = pneg %p98
      %p200 = pneg %p122
      %p201 = pneg %p119
      %p202 = pneg %p143
      %p203 = pneg %p140
      %s204 = smul.u32 32, %s17
      %p205 = scmp.lt.s32.totalorder %s204, 63
      %s206 = scalar_select %p205, %s204, 63
      %s207 = smul.addr %s206, 4
      %s208 = scalar_lea.vmem %s0, %s207
      %s209 = smul.u32 32, %s17
      %p211 = scmp.eq.s32.totalorder %s17, 0
      // Predicated region
      $region37: #{conv_relu_forward.2} parent=35 // pred_check
        %p212 = pneg %p211
      $region38: #{conv_relu_forward.2} parent=35 // pred_check_branch
        %214 = sbr.rel (%p212) target = $region40
      $region39: #{conv_relu_forward.2} parent=35 // pred_region
        %215 = vst [vmem:[#allocation2] sm:$0x1] 0.0
        %216 = vst [vmem:[#allocation3] sm:$0x1] 0.0
      $region40: #{conv_relu_forward.2} parent=35 // pred_fallthru
        _
      %v217 = vld [vmem:[%s208] sm:$0xf]
      %v218 = vld [vmem:[%s208 + $0x4] sm:$0xf]
      %v219 = vld [vmem:[%s208 + $0x8] sm:$0xf]
      %v220 = vld [vmem:[%s208 + $0xc] sm:$0xf]
      %v221 = vld [vmem:[%s208 + $0x10] sm:$0xf]
      %v222 = vld [vmem:[%s208 + $0x14] sm:$0xf]
      %v223 = vld [vmem:[%s208 + $0x18] sm:$0xf]
      %v224 = vld [vmem:[%s208 + $0x1c] sm:$0xf]
      %v225 = vld [vmem:[%s208 + $0x20] sm:$0xf]
      %v226 = vld [vmem:[%s208 + $0x24] sm:$0xf]
      %v227 = vld [vmem:[%s208 + $0x28] sm:$0xf]
      %v228 = vld [vmem:[%s208 + $0x2c] sm:$0xf]
      %v229 = vld [vmem:[%s208 + $0x30] sm:$0xf]
      %v230 = vld [vmem:[%s208 + $0x34] sm:$0xf]
      %v231 = vld [vmem:[%s208 + $0x38] sm:$0xf]
      %v232 = vld [vmem:[%s208 + $0x3c] sm:$0xf]
      %v233 = vld [vmem:[%s208 + $0x40] sm:$0xf]
      %v234 = vld [vmem:[%s208 + $0x44] sm:$0xf]
      %v235 = vld [vmem:[%s208 + $0x48] sm:$0xf]
      %v236 = vld [vmem:[%s208 + $0x4c] sm:$0xf]
      %v237 = vld [vmem:[%s208 + $0x50] sm:$0xf]
      %v238 = vld [vmem:[%s208 + $0x54] sm:$0xf]
      %v239 = vld [vmem:[%s208 + $0x58] sm:$0xf]
      %v240 = vld [vmem:[%s208 + $0x5c] sm:$0xf]
      %v241 = vld [vmem:[%s208 + $0x60] sm:$0xf]
      %v242 = vld [vmem:[%s208 + $0x64] sm:$0xf]
      %v243 = vld [vmem:[%s208 + $0x68] sm:$0xf]
      %v244 = vld [vmem:[%s208 + $0x6c] sm:$0xf]
      %v245 = vld [vmem:[%s208 + $0x70] sm:$0xf]
      %v246 = vld [vmem:[%s208 + $0x74] sm:$0xf]
      %v247 = vld [vmem:[%s208 + $0x78] sm:$0xf]
      %v248 = vld [vmem:[%s208 + $0x7c] sm:$0xf]
      %v249 = vld [vmem:[%s1] sm:$0xf]
      %v250 = vld [vmem:[%s1 + $0x4] sm:$0xf]
      %v251 = vld [vmem:[%s1 + $0x8] sm:$0xf]
      %v252 = vld [vmem:[%s1 + $0xc] sm:$0xf]
      %v253 = vld [vmem:[%s1 + $0x10] sm:$0xf]
      %v286 = vunpack.c.l.b16 %v217
      %v287 = vunpack.c.l.b16 %v218
      %v288 = vunpack.c.l.b16 %v219
      %v289 = vunpack.c.l.b16 %v220
      %v290 = vunpack.c.l.b16 %v221
      %v291 = vunpack.c.l.b16 %v222
      %v292 = vunpack.c.l.b16 %v223
      %v293 = vunpack.c.l.b16 %v224
      %v294 = vunpack.c.l.b16 %v225
      %v295 = vunpack.c.l.b16 %v226
      %v296 = vunpack.c.l.b16 %v227
      %v297 = vunpack.c.l.b16 %v228
      %v298 = vunpack.c.l.b16 %v229
      %v299 = vunpack.c.l.b16 %v230
      %v300 = vunpack.c.l.b16 %v231
      %v301 = vunpack.c.l.b16 %v232
      %v302 = vunpack.c.l.b16 %v233
      %v303 = vunpack.c.l.b16 %v234
      %v304 = vunpack.c.l.b16 %v235
      %v305 = vunpack.c.l.b16 %v236
      %v306 = vunpack.c.l.b16 %v237
      %v307 = vunpack.c.l.b16 %v238
      %v308 = vunpack.c.l.b16 %v239
      %v309 = vunpack.c.l.b16 %v240
      %v310 = vunpack.c.l.b16 %v241
      %v311 = vunpack.c.l.b16 %v242
      %v312 = vunpack.c.l.b16 %v243
      %v313 = vunpack.c.l.b16 %v244
      %v314 = vunpack.c.l.b16 %v245
      %v315 = vunpack.c.l.b16 %v246
      %v316 = vunpack.c.l.b16 %v247
      %v317 = vunpack.c.l.b16 %v248
      %v318 = vpack.c.b16 %v287, %v286
      %v319 = vpack.c.b16 %v289, %v288
      %v320 = vpack.c.b16 %v291, %v290
      %v321 = vpack.c.b16 %v293, %v292
      %v322 = vpack.c.b16 %v295, %v294
      %v323 = vpack.c.b16 %v297, %v296
      %v324 = vpack.c.b16 %v299, %v298
      %v325 = vpack.c.b16 %v301, %v300
      %v326 = vpack.c.b16 %v303, %v302
      %v327 = vpack.c.b16 %v305, %v304
      %v328 = vpack.c.b16 %v307, %v306
      %v329 = vpack.c.b16 %v309, %v308
      %v330 = vpack.c.b16 %v311, %v310
      %v331 = vpack.c.b16 %v313, %v312
      %v332 = vpack.c.b16 %v315, %v314
      %v333 = vpack.c.b16 %v317, %v316
      %v339 = vunpack.c.l.b16 %v249
      %v340 = vunpack.c.l.b16 %v250
      %v341 = vunpack.c.l.b16 %v251
      %v342 = vunpack.c.l.b16 %v252
      %v343 = vunpack.c.l.b16 %v253
      %v344 = vpack.c.b16 %v340, %v339
      %v345 = vpack.c.b16 %v342, %v341
      %v346 = vpack.c.b16 %v343, %v343
      %vm349 = vcmask 326656
      %v351 = vsel %vm349, %v318, 0
      %v354 = vsel %vm349, %v319, 0
      %v357 = vsel %vm349, %v320, 0
      %v360 = vsel %vm349, %v321, 0
      %v363 = vsel %vm349, %v322, 0
      %v366 = vsel %vm349, %v323, 0
      %v369 = vsel %vm349, %v324, 0
      %v372 = vsel %vm349, %v325, 0
      %v375 = vsel %vm349, %v326, 0
      %v378 = vsel %vm349, %v327, 0
      %v381 = vsel %vm349, %v328, 0
      %v384 = vsel %vm349, %v329, 0
      %v387 = vsel %vm349, %v330, 0
      %v390 = vsel %vm349, %v331, 0
      %v393 = vsel %vm349, %v332, 0
      %v396 = vsel %vm349, %v333, 0
      %vm398 = vcmask 1043456
      %v400 = vsel %vm398, %v346, 0
      %402 = vmatpush.bf16.msra.mxu0 0
      %403 = vmatpush.bf16.msra.mxu0 0
      %404 = vmatpush.bf16.msra.mxu0 0
      %405 = vmatpush.bf16.msra.mxu0 0
      %406 = vmatpush.bf16.msra.mxu0 0
      %407 = vmatpush.bf16.msra.mxu0 %v400
      %408 = vmatpush.bf16.msra.mxu0 %v345
      %409 = vmatpush.bf16.msra.mxu0 %v344
      %410 = vmatmul.bf16.gmra.mxu0 %v351
      %v411 = vpop.f32.mrf.mxu0
      %v412 = vadd.f32 0.0, %v411
      %v413 = vpop.f32.mrf.mxu0
      %v414 = vadd.f32 0.0, %v413
      %415 = vmatmul.bf16.gmra.mxu0 %v354
      %v416 = vpop.f32.mrf.mxu0
      %v417 = vadd.f32 0.0, %v416
      %v418 = vpop.f32.mrf.mxu0
      %v419 = vadd.f32 0.0, %v418
      %420 = vmatmul.bf16.gmra.mxu0 %v357
      %v421 = vpop.f32.mrf.mxu0
      %v422 = vadd.f32 0.0, %v421
      %v423 = vpop.f32.mrf.mxu0
      %v424 = vadd.f32 0.0, %v423
      %425 = vmatmul.bf16.gmra.mxu0 %v360
      %v426 = vpop.f32.mrf.mxu0
      %v427 = vadd.f32 0.0, %v426
      %v428 = vpop.f32.mrf.mxu0
      %v429 = vadd.f32 0.0, %v428
      %430 = vmatmul.bf16.gmra.mxu0 %v363
      %v431 = vpop.f32.mrf.mxu0
      %v432 = vadd.f32 0.0, %v431
      %v433 = vpop.f32.mrf.mxu0
      %v434 = vadd.f32 0.0, %v433
      %435 = vmatmul.bf16.gmra.mxu0 %v366
      %v436 = vpop.f32.mrf.mxu0
      %v437 = vadd.f32 0.0, %v436
      %v438 = vpop.f32.mrf.mxu0
      %v439 = vadd.f32 0.0, %v438
      %440 = vmatmul.bf16.gmra.mxu0 %v369
      %v441 = vpop.f32.mrf.mxu0
      %v442 = vadd.f32 0.0, %v441
      %v443 = vpop.f32.mrf.mxu0
      %v444 = vadd.f32 0.0, %v443
      %445 = vmatmul.bf16.gmra.mxu0 %v372
      %v446 = vpop.f32.mrf.mxu0
      %v447 = vadd.f32 0.0, %v446
      %v448 = vpop.f32.mrf.mxu0
      %v449 = vadd.f32 0.0, %v448
      %450 = vmatmul.bf16.gmra.mxu0 %v375
      %v451 = vpop.f32.mrf.mxu0
      %v452 = vadd.f32 0.0, %v451
      %v453 = vpop.f32.mrf.mxu0
      %v454 = vadd.f32 0.0, %v453
      %455 = vmatmul.bf16.gmra.mxu0 %v378
      %v456 = vpop.f32.mrf.mxu0
      %v457 = vadd.f32 0.0, %v456
      %v458 = vpop.f32.mrf.mxu0
      %v459 = vadd.f32 0.0, %v458
      %460 = vmatmul.bf16.gmra.mxu0 %v381
      %v461 = vpop.f32.mrf.mxu0
      %v462 = vadd.f32 0.0, %v461
      %v463 = vpop.f32.mrf.mxu0
      %v464 = vadd.f32 0.0, %v463
      %465 = vmatmul.bf16.gmra.mxu0 %v384
      %v466 = vpop.f32.mrf.mxu0
      %v467 = vadd.f32 0.0, %v466
      %v468 = vpop.f32.mrf.mxu0
      %v469 = vadd.f32 0.0, %v468
      %470 = vmatmul.bf16.gmra.mxu0 %v387
      %v471 = vpop.f32.mrf.mxu0
      %v472 = vadd.f32 0.0, %v471
      %v473 = vpop.f32.mrf.mxu0
      %v474 = vadd.f32 0.0, %v473
      %475 = vmatmul.bf16.gmra.mxu0 %v390
      %v476 = vpop.f32.mrf.mxu0
      %v477 = vadd.f32 0.0, %v476
      %v478 = vpop.f32.mrf.mxu0
      %v479 = vadd.f32 0.0, %v478
      %480 = vmatmul.bf16.gmra.mxu0 %v393
      %v481 = vpop.f32.mrf.mxu0
      %v482 = vadd.f32 0.0, %v481
      %v483 = vpop.f32.mrf.mxu0
      %v484 = vadd.f32 0.0, %v483
      %485 = vmatmul.bf16.gmra.mxu0 %v396
      %v486 = vpop.f32.mrf.mxu0
      %v487 = vadd.f32 0.0, %v486
      %v488 = vpop.f32.mrf.mxu0
      %v489 = vadd.f32 0.0, %v488
      %490 = vdwg.mxu0
      %v491 = vld [vmem:[#allocation2] sm:$0x1]
      %v492 = vadd.f32 %v412, %v414
      %v493 = vadd.f32 %v492, %v417
      %v494 = vadd.f32 %v493, %v419
      %v495 = vadd.f32 %v494, %v422
      %v496 = vadd.f32 %v495, %v424
      %v497 = vadd.f32 %v496, %v427
      %v498 = vadd.f32 %v497, %v429
      %v499 = vadd.f32 %v498, %v432
      %v500 = vadd.f32 %v499, %v434
      %v501 = vadd.f32 %v500, %v437
      %v502 = vadd.f32 %v501, %v439
      %v503 = vadd.f32 %v502, %v442
      %v504 = vadd.f32 %v503, %v444
      %v505 = vadd.f32 %v504, %v447
      %v506 = vadd.f32 %v505, %v449
      %v507 = vadd.f32 %v506, %v452
      %v508 = vadd.f32 %v507, %v454
      %v509 = vadd.f32 %v508, %v457
      %v510 = vadd.f32 %v509, %v459
      %v511 = vadd.f32 %v510, %v462
      %v512 = vadd.f32 %v511, %v464
      %v513 = vadd.f32 %v512, %v467
      %v514 = vadd.f32 %v513, %v469
      %v515 = vadd.f32 %v514, %v472
      %v516 = vadd.f32 %v515, %v474
      %v517 = vadd.f32 %v516, %v477
      %v518 = vadd.f32 %v517, %v479
      %v519 = vadd.f32 %v518, %v482
      %v520 = vadd.f32 %v519, %v484
      %v521 = vadd.f32 %v520, %v487
      %v522 = vadd.f32 %v521, %v489
      %v523 = vrot.slane %v522, 4
      %v524 = vadd.f32 %v522, %v523
      %v525 = vrot.slane %v524, 2
      %v526 = vadd.f32 %v524, %v525
      %v527 = vrot.slane %v526, 1
      %v528 = vadd.f32 %v526, %v527
      %v529 = vadd.f32 %v491, %v528
      %530 = vst [vmem:[#allocation2] sm:$0x1] %v529
      %v531 = vld [vmem:[#allocation3] sm:$0x1]
      %v532 = vmul.f32 %v412, %v412
      %v533 = vmul.f32 %v414, %v414
      %v534 = vmul.f32 %v417, %v417
      %v535 = vmul.f32 %v419, %v419
      %v536 = vmul.f32 %v422, %v422
      %v537 = vmul.f32 %v424, %v424
      %v538 = vmul.f32 %v427, %v427
      %v539 = vmul.f32 %v429, %v429
      %v540 = vmul.f32 %v432, %v432
      %v541 = vmul.f32 %v434, %v434
      %v542 = vmul.f32 %v437, %v437
      %v543 = vmul.f32 %v439, %v439
      %v544 = vmul.f32 %v442, %v442
      %v545 = vmul.f32 %v444, %v444
      %v546 = vmul.f32 %v447, %v447
      %v547 = vmul.f32 %v449, %v449
      %v548 = vmul.f32 %v452, %v452
      %v549 = vmul.f32 %v454, %v454
      %v550 = vmul.f32 %v457, %v457
      %v551 = vmul.f32 %v459, %v459
      %v552 = vmul.f32 %v462, %v462
      %v553 = vmul.f32 %v464, %v464
      %v554 = vmul.f32 %v467, %v467
      %v555 = vmul.f32 %v469, %v469
      %v556 = vmul.f32 %v472, %v472
      %v557 = vmul.f32 %v474, %v474
      %v558 = vmul.f32 %v477, %v477
      %v559 = vmul.f32 %v479, %v479
      %v560 = vmul.f32 %v482, %v482
      %v561 = vmul.f32 %v484, %v484
      %v562 = vmul.f32 %v487, %v487
      %v563 = vmul.f32 %v489, %v489
      %v564 = vadd.f32 %v532, %v533
      %v565 = vadd.f32 %v564, %v534
      %v566 = vadd.f32 %v565, %v535
      %v567 = vadd.f32 %v566, %v536
      %v568 = vadd.f32 %v567, %v537
      %v569 = vadd.f32 %v568, %v538
      %v570 = vadd.f32 %v569, %v539
      %v571 = vadd.f32 %v570, %v540
      %v572 = vadd.f32 %v571, %v541
      %v573 = vadd.f32 %v572, %v542
      %v574 = vadd.f32 %v573, %v543
      %v575 = vadd.f32 %v574, %v544
      %v576 = vadd.f32 %v575, %v545
      %v577 = vadd.f32 %v576, %v546
      %v578 = vadd.f32 %v577, %v547
      %v579 = vadd.f32 %v578, %v548
      %v580 = vadd.f32 %v579, %v549
      %v581 = vadd.f32 %v580, %v550
      %v582 = vadd.f32 %v581, %v551
      %v583 = vadd.f32 %v582, %v552
      %v584 = vadd.f32 %v583, %v553
      %v585 = vadd.f32 %v584, %v554
      %v586 = vadd.f32 %v585, %v555
      %v587 = vadd.f32 %v586, %v556
      %v588 = vadd.f32 %v587, %v557
      %v589 = vadd.f32 %v588, %v558
      %v590 = vadd.f32 %v589, %v559
      %v591 = vadd.f32 %v590, %v560
      %v592 = vadd.f32 %v591, %v561
      %v593 = vadd.f32 %v592, %v562
      %v594 = vadd.f32 %v593, %v563
      %v595 = vrot.slane %v594, 4
      %v596 = vadd.f32 %v594, %v595
      %v597 = vrot.slane %v596, 2
      %v598 = vadd.f32 %v596, %v597
      %v599 = vrot.slane %v598, 1
      %v600 = vadd.f32 %v598, %v599
      %v601 = vadd.f32 %v531, %v600
      %602 = vst [vmem:[#allocation3] sm:$0x1] %v601
      %p603 = scmp.eq.s32.totalorder %s17, 1
      // Predicated region
      $region41: #{conv_relu_forward.2} parent=35 // pred_check
        %p604 = pneg %p603
      $region42: #{conv_relu_forward.2} parent=35 // pred_check_branch
        %606 = sbr.rel (%p604) target = $region44
      $region43: #{conv_relu_forward.2} parent=35 // pred_region
        %v607 = vld [vmem:[#allocation2] sm:$0x1]
        %v608 = vmul.f32 %v607, 0.001953125
        %v609 = vld [vmem:[#allocation3] sm:$0x1]
        %v610 = vmul.f32 %v609, 0.001953125
        %v611 = vmul.f32 %v608, %v608
        %v612 = vsub.f32 %v610, %v611
        %v613 = vmax.f32 %v612, 0.0
        %v614 = vld [vmem:[%s2] sm:$0x1]
        %v615 = vadd.f32 %v613, 1e-05
        %v616 = vrsqrt.pop %v615
        %v617 = vmul.f32 %v616, %v615
        %v618 = vmul.f32 %v617, %v616
        %v619 = vmul.f32 0.5, %v618
        %v620 = vsub.f32 1.5, %v619
        %v621 = vmul.f32 %v616, %v620
        %vm622 = vweird.f32 %v615
        %vm623 = vweird.f32 %v616
        %vm624 = vmor %vm622, %vm623
        %v625 = vsel %vm624, %v616, %v621
        %v626 = vmul.f32 %v614, %v625
        %627 = vst [vmem:[%s4] sm:$0x1] %v626
        %v628 = vld [vmem:[%s3] sm:$0x1]
        %v629 = vmul.f32 %v608, %v626
        %v630 = vsub.f32 %v628, %v629
        %631 = vst [vmem:[%s5] sm:$0x1] %v630
      $region44: #{conv_relu_forward.2} parent=35 // pred_fallthru
        _
      // Predicated region
      $region45: #{conv_relu_forward.2} parent=35 // pred_check
        %p632 = pneg %p119
      $region46: #{conv_relu_forward.2} parent=35 // pred_check_branch
        %634 = sbr.rel (%p632) target = $region48
      $region47: #{conv_relu_forward.2} parent=35 // pred_region
        _
      $region48: #{conv_relu_forward.2} parent=35 // pred_fallthru
        _
      // Predicated region
      $region49: #{conv_relu_forward.2} parent=35 // pred_check
        %p635 = pneg %p140
      $region50: #{conv_relu_forward.2} parent=35 // pred_check_branch
        %637 = sbr.rel (%p635) target = $region52
      $region51: #{conv_relu_forward.2} parent=35 // pred_region
        _
      $region52: #{conv_relu_forward.2} parent=35 // pred_fallthru
        _
      // Predicated region
      $region53: #{conv_relu_forward.2} parent=35 // pred_check
        %p638 = pneg %p119
      $region54: #{conv_relu_forward.2} parent=35 // pred_check_branch
        %640 = sbr.rel (%p638) target = $region56
      $region55: #{conv_relu_forward.2} parent=35 // pred_region
        _
      $region56: #{conv_relu_forward.2} parent=35 // pred_fallthru
        _
      // Predicated region
      $region57: #{conv_relu_forward.2} parent=35 // pred_check
        %p641 = pneg %p140
      $region58: #{conv_relu_forward.2} parent=35 // pred_check_branch
        %643 = sbr.rel (%p641) target = $region60
      $region59: #{conv_relu_forward.2} parent=35 // pred_region
        _
      $region60: #{conv_relu_forward.2} parent=35 // pred_fallthru
        _
    $region36: #{conv_relu_forward.2} parent=5 // pred_fallthru
      _
    %p644 = scmp.le.s32.totalorder 2, %s12
    // Predicated region
    $region61: #{conv_relu_forward.2} parent=5 // pred_check
      %p645 = pneg %p644
    $region62: #{conv_relu_forward.2} parent=5 // pred_check_branch
      %647 = sbr.rel (%p645) target = $region64
    $region63: #{conv_relu_forward.2} parent=5 // pred_region
      %s648 = ssub.s32 %s12, 2
    $region64: #{conv_relu_forward.2} parent=5 // pred_fallthru
      _
  $region6: #{conv_relu_forward.2} parent=0 // loop_footer
    %s16 = sadd.s32 1, %s12
  $region7: #{conv_relu_forward.2} parent=0 // loop_footer_branch
    %11 = sbr.rel target = $region3
  $region8: #{conv_relu_forward.2} parent=0 // loop_exit
    _

</llo_original>
